<compile_context>
chip_gen: v5e
topology: v5e:2x2
jax: 0.10.0
libtpu: 0.0.40
codegen_flags: <defaults>
</compile_context>

<pallas_src>
import functools

import jax
import jax.numpy as jnp
from jax.experimental import pallas as pl
from jax.experimental.pallas import tpu as pltpu


def _round_up(x, m):
    return ((x + m - 1) // m) * m


# ---------------------------------------------------------------------------
# Kernel 1: per-layer projection  P = H @ [W_self | W_neigh]  (+ bias on self).
# ---------------------------------------------------------------------------
def _proj_kernel(h_ref, wcat_ref, b_ref, pself_ref, pneigh_ref, *, fout_pad):
    # Single fused MXU push with K = Fin_pad instead of two tiny-K matmuls.
    p = jnp.dot(h_ref[...], wcat_ref[...], preferred_element_type=jnp.float32)
    pself_ref[...] = (p[:, :fout_pad] + b_ref[...]).astype(pself_ref.dtype)
    pneigh_ref[...] = p[:, fout_pad:].astype(pneigh_ref.dtype)


def _project(h_pad, w_cat_pad, bias_pad, *, tm):
    n_pad, fin_pad = h_pad.shape
    fout_pad = bias_pad.shape[1]
    kernel = functools.partial(_proj_kernel, fout_pad=fout_pad)
    return pl.pallas_call(
        kernel,
        out_shape=(
            jax.ShapeDtypeStruct((n_pad, fout_pad), jnp.float32),   # self + bias
            jax.ShapeDtypeStruct((n_pad, fout_pad), jnp.bfloat16),  # neighbor proj
        ),
        grid_spec=pltpu.PrefetchScalarGridSpec(
            num_scalar_prefetch=0,
            grid=(n_pad // tm,),
            in_specs=[
                pl.BlockSpec((tm, fin_pad), lambda i: (i, 0)),          # H row-block
                pl.BlockSpec((fin_pad, 2 * fout_pad), lambda i: (0, 0)),  # [Ws|Wn]
                pl.BlockSpec((1, fout_pad), lambda i: (0, 0)),            # bias
            ],
            out_specs=(
                pl.BlockSpec((tm, fout_pad), lambda i: (i, 0)),
                pl.BlockSpec((tm, fout_pad), lambda i: (i, 0)),
            ),
        ),
        compiler_params=pltpu.CompilerParams(
            dimension_semantics=("parallel",)),
    )(h_pad, w_cat_pad, bias_pad)


# ---------------------------------------------------------------------------
# Kernel 2: aggregation  out = A @ P_neigh + P_self  (+ ReLU), K-tiled over N.
# ---------------------------------------------------------------------------
def _agg_kernel(a_ref, pn_ref, ps_ref, o_ref, acc_ref, *, apply_relu):
    k = pl.program_id(1)

    @pl.when(k == 0)
    def _():
        acc_ref[...] = jnp.zeros_like(acc_ref)

    # bf16 x bf16 -> f32 accumulation on the MXU.
    acc_ref[...] += jnp.dot(a_ref[...], pn_ref[...],
                            preferred_element_type=jnp.float32)

    @pl.when(k == pl.num_programs(1) - 1)
    def _():
        out = acc_ref[...] + ps_ref[...]   # bias already folded into ps
        if apply_relu:
            out = jnp.maximum(out, 0.0)
        o_ref[...] = out.astype(o_ref.dtype)


def _aggregate(a_bf16, p_neigh, p_self, *, apply_relu, tm, tk):
    n_pad = a_bf16.shape[0]
    fout_pad = p_neigh.shape[1]
    kernel = functools.partial(_agg_kernel, apply_relu=apply_relu)
    return pl.pallas_call(
        kernel,
        out_shape=jax.ShapeDtypeStruct((n_pad, fout_pad), jnp.float32),
        grid_spec=pltpu.PrefetchScalarGridSpec(
            num_scalar_prefetch=0,
            grid=(n_pad // tm, n_pad // tk),
            in_specs=[
                pl.BlockSpec((tm, tk), lambda i, k: (i, k)),        # A tile (bf16)
                pl.BlockSpec((tk, fout_pad), lambda i, k: (k, 0)),  # P_neigh k-tile
                pl.BlockSpec((tm, fout_pad), lambda i, k: (i, 0)),  # P_self (i only)
            ],
            out_specs=pl.BlockSpec((tm, fout_pad), lambda i, k: (i, 0)),
            scratch_shapes=[pltpu.VMEM((tm, fout_pad), jnp.float32)],
        ),
        compiler_params=pltpu.CompilerParams(
            dimension_semantics=("parallel", "arbitrary")),
    )(a_bf16, p_neigh, p_self)


# ---------------------------------------------------------------------------
# Model wrapper
# ---------------------------------------------------------------------------
def init_graphsage_params(key, in_feats, n_hidden, n_classes, n_layers):
    """Deterministic params for n_layers+1 SAGEConv layers (DGL-style)."""
    dims = [in_feats] + [n_hidden] * n_layers + [n_classes]
    params = []
    for li in range(len(dims) - 1):
        fin, fout = dims[li], dims[li + 1]
        key, k1, k2 = jax.random.split(key, 3)
        limit = (6.0 / (fin + fout)) ** 0.5    # xavier-uniform-like (DGL default)
        w_self = jax.random.uniform(k1, (fin, fout), jnp.float32, -limit, limit)
        w_neigh = jax.random.uniform(k2, (fin, fout), jnp.float32, -limit, limit)
        bias = jnp.zeros((1, fout), jnp.float32)
        params.append((w_self, w_neigh, bias))
    return params


def graphsage_forward(a_norm, inputs, params, *, tile=256):
    """GraphSAGE.forward: SAGEConv (mean) stack with ReLU between layers.
    Dropout is identity in eval mode (deterministic forward)."""
    n = a_norm.shape[0]
    n_out = params[-1][0].shape[1]

    # Row tile tm and reduction (node) tile tk; 128-multiple for lane alignment.
    tm = tk = min(tile, _round_up(n, 256))
    n_pad = _round_up(n, tm)

    # Pad adjacency once; cast once to bf16 (values are 1/deg, bf16-safe).
    a_pad = jnp.zeros((n_pad, n_pad), jnp.float32).at[:n, :n].set(a_norm)
    a_bf16 = a_pad.astype(jnp.bfloat16)

    fin = inputs.shape[1]
    fin_pad = _round_up(fin, 128)
    h = jnp.zeros((n_pad, fin_pad), jnp.float32).at[:n, :fin].set(inputs)

    n_layers = len(params)
    for li, (w_self, w_neigh, bias) in enumerate(params):
        f_in, f_out = w_self.shape
        f_in_pad = _round_up(f_in, 128)
        f_out_pad = _round_up(f_out, 128)
        assert h.shape[1] == f_in_pad

        # Lane-dense padded fused weight [W_self | W_neigh] and bias.
        w_cat = jnp.zeros((f_in_pad, 2 * f_out_pad), jnp.float32)
        w_cat = w_cat.at[:f_in, :f_out].set(w_self)
        w_cat = w_cat.at[:f_in, f_out_pad:f_out_pad + f_out].set(w_neigh)
        b_pad = jnp.zeros((1, f_out_pad), jnp.float32).at[:, :f_out].set(bias)

        p_self, p_neigh = _project(h, w_cat, b_pad, tm=tm)
        h = _aggregate(a_bf16, p_neigh, p_self,
                       apply_relu=(li != n_layers - 1), tm=tm, tk=tk)
        # TODO(synk): training-mode dropout (nn.Dropout) omitted; identity at eval.
        # TODO(synk): block-sparse adjacency (scalar-prefetch tile skipping) for
        # very large / very sparse graphs; dense A_mean kept here for clarity.

    return h[:n, :n_out]


def graphsage_reference(a_norm, inputs, params):
    h = inputs
    for li, (w_self, w_neigh, bias) in enumerate(params):
        h_neigh = a_norm @ h
        h = h @ w_self + h_neigh @ w_neigh + bias
        if li != len(params) - 1:
            h = jnp.maximum(h, 0.0)
    return h


if __name__ == "__main__":
    key = jax.random.PRNGKey(0)

    # Small synthetic graph consistent with the module's shapes; sizes are
    # deliberately NOT multiples of the tile sizes to exercise the padding path.
    N = 500
    in_feats = 64
    n_hidden = 96
    n_classes = 10
    n_layers = 2          # -> 3 SAGEConv layers: in->h, h->h, h->classes

    key, k_adj, k_feat, k_param = jax.random.split(key, 4)

    # Random sparse-ish adjacency, row-normalized -> mean-aggregation matrix.
    adj = (jax.random.uniform(k_adj, (N, N)) < 0.05).astype(jnp.float32)
    deg = jnp.maximum(adj.sum(axis=1, keepdims=True), 1.0)
    a_norm = adj / deg

    inputs = jax.random.normal(k_feat, (N, in_feats), jnp.float32)
    params = init_graphsage_params(k_param, in_feats, n_hidden, n_classes,
                                   n_layers)

    out = graphsage_forward(a_norm, inputs, params)
    out = jax.block_until_ready(out)

    ref = graphsage_reference(a_norm, inputs, params)
    assert out.shape == (N, n_classes), out.shape
    # bf16 adjacency / neighbor projections (f32 accumulation) -> looser tol.
    err = float(jnp.max(jnp.abs(out - ref)))
    assert jnp.allclose(out, ref, atol=5e-2, rtol=5e-2), f"mismatch, max|d|={err}"

    print("KERNEL_OK")
</pallas_src>

<mosaic_0001>
module attributes {stable_mosaic.version = 11 : i64} {
  func.func @_proj_kernel(%arg0: i32, %arg1: memref<256x128xf32, #tpu.memory_space<vmem>>, %arg2: memref<128x256xf32, #tpu.memory_space<vmem>>, %arg3: memref<1x128xf32, #tpu.memory_space<vmem>>, %arg4: memref<256x128xf32, #tpu.memory_space<vmem>>, %arg5: memref<256x128xbf16, #tpu.memory_space<vmem>>) attributes {dimension_semantics = [#tpu.dimension_semantics<parallel>], iteration_bounds = array<i64: 2>, scalar_prefetch = 0 : i64, scratch_operands = 0 : i64, tpu.core_type = #tpu.core_type<tc>, window_params = [{transform_indices = @transform_0, window_bounds = array<i64: 256, 128>}, {pipeline_mode = #tpu.pipeline_mode<synchronous>, transform_indices = @transform_1, window_bounds = array<i64: 128, 256>}, {pipeline_mode = #tpu.pipeline_mode<synchronous>, transform_indices = @transform_2, window_bounds = array<i64: 1, 128>}, {transform_indices = @transform_3, window_bounds = array<i64: 256, 128>}, {transform_indices = @transform_4, window_bounds = array<i64: 256, 128>}]} {
    %c0 = arith.constant 0 : index
    %c0_0 = arith.constant 0 : index
    %0 = vector.load %arg1[%c0, %c0_0] : memref<256x128xf32, #tpu.memory_space<vmem>>, vector<256x128xf32>
    %c0_1 = arith.constant 0 : index
    %c0_2 = arith.constant 0 : index
    %1 = vector.load %arg2[%c0_1, %c0_2] : memref<128x256xf32, #tpu.memory_space<vmem>>, vector<128x256xf32>
    %cst = arith.constant dense<0.000000e+00> : vector<256x256xf32>
    %2 = tpu.matmul %0, %1, %cst {dimension_numbers = #tpu.dot_dimension_numbers<[1], [0], [0], [1], [0, 0, 1, 1], [], []>} : vector<256x128xf32>, vector<128x256xf32>, vector<256x256xf32> -> vector<256x256xf32>
    %3 = vector.extract_strided_slice %2 {offsets = [0, 0], sizes = [256, 128], strides = [1, 1]} : vector<256x256xf32> to vector<256x128xf32>
    %c0_3 = arith.constant 0 : index
    %c0_4 = arith.constant 0 : index
    %4 = vector.load %arg3[%c0_3, %c0_4] : memref<1x128xf32, #tpu.memory_space<vmem>>, vector<1x128xf32>
    %5 = vector.broadcast %4 : vector<1x128xf32> to vector<256x128xf32>
    %6 = arith.addf %3, %5 : vector<256x128xf32>
    %c0_5 = arith.constant 0 : index
    %c0_6 = arith.constant 0 : index
    %7 = vector.load %arg4[%c0_5, %c0_6] : memref<256x128xf32, #tpu.memory_space<vmem>>, vector<256x128xf32>
    tpu.vector_store %arg4[%c0_5, %c0_6], %6 {strides = array<i32>} : memref<256x128xf32, #tpu.memory_space<vmem>>, vector<256x128xf32>,
    %8 = vector.extract_strided_slice %2 {offsets = [0, 128], sizes = [256, 128], strides = [1, 1]} : vector<256x256xf32> to vector<256x128xf32>
    %9 = arith.truncf %8 : vector<256x128xf32> to vector<256x128xbf16>
    %c0_7 = arith.constant 0 : index
    %c0_8 = arith.constant 0 : index
    %10 = vector.load %arg5[%c0_7, %c0_8] : memref<256x128xbf16, #tpu.memory_space<vmem>>, vector<256x128xbf16>
    tpu.vector_store %arg5[%c0_7, %c0_8], %9 {strides = array<i32>} : memref<256x128xbf16, #tpu.memory_space<vmem>>, vector<256x128xbf16>,
    return
  }
  func.func @transform_0(%arg0: i32) -> (i32, i32) {
    %c0_i32 = arith.constant 0 : i32
    %c0_i32_0 = arith.constant 0 : i32
    return %arg0, %c0_i32 : i32, i32
  }
  func.func @transform_1(%arg0: i32) -> (i32, i32) {
    %c0_i32 = arith.constant 0 : i32
    %c0_i32_0 = arith.constant 0 : i32
    %c0_i32_1 = arith.constant 0 : i32
    return %c0_i32, %c0_i32_0 : i32, i32
  }
  func.func @transform_2(%arg0: i32) -> (i32, i32) {
    %c0_i32 = arith.constant 0 : i32
    %c0_i32_0 = arith.constant 0 : i32
    %c0_i32_1 = arith.constant 0 : i32
    return %c0_i32, %c0_i32_0 : i32, i32
  }
  func.func @transform_3(%arg0: i32) -> (i32, i32) {
    %c0_i32 = arith.constant 0 : i32
    %c0_i32_0 = arith.constant 0 : i32
    return %arg0, %c0_i32 : i32, i32
  }
  func.func @transform_4(%arg0: i32) -> (i32, i32) {
    %c0_i32 = arith.constant 0 : i32
    %c0_i32_0 = arith.constant 0 : i32
    return %arg0, %c0_i32 : i32, i32
  }
}

</mosaic_0001>

<llo_original>
// kernel: tpu_custom_call.1
$region0: #{tpu_custom_call.1}
  #allocation0 [shape = 'u32[]', space=smem, size = 0x4, offset = 0x4, fixed_abs, tag = 'smem constant byte address 0x4 - core index']
  #allocation1 [shape = 'u32[72,128]{1,0:T(1,128)}', space=vmem, size = 0x9000, scoped, tag = 'internal scratch']
  %s0 = inlined_call_operand.hbm [shape: f32[512,128], index: 0, kind: input, shape index: {}]
  %s1 = inlined_call_operand.hbm [shape: f32[128,256], index: 1, kind: input, shape index: {}]
  %s2 = inlined_call_operand.vmem [shape: f32[1,128], index: 2, kind: input, shape index: {}]
  %s3 = inlined_call_operand.hbm [shape: f32[512,128], index: 3, kind: output, shape index: {0}]
  %s4 = inlined_call_operand.hbm [shape: bf16[512,128], index: 4, kind: output, shape index: {1}]
  %5 = xla_tuple %s3, %s4
  %s6 = sld [smem:[#allocation0]]
  $region61: #{tpu_custom_call.1} parent=0
    _
  %s8 = ssub.s32 1, %s6
  %s9 = scalar_select 0, %s8, %s6
  $region1: #{tpu_custom_call.1} parent=0
    #allocation2 [shape = 'u8[262144]{0}', space=vmem, size = 0x40000, scoped, tag = 'input window, operand 0']
    #allocation3 [shape = 's32[2]{0}', space=sflag, size = 0x8, scoped, tag = 'scoped memory for tpu_custom_call.1']
    #allocation4 [shape = 's32[2]{0}', space=sflag, size = 0x8, scoped, tag = 'scoped memory for tpu_custom_call.1']
    #allocation5 [shape = 'u8[131072]{0}', space=vmem, size = 0x20000, scoped, tag = 'input window, operand 1, single buffered']
    #allocation6 [shape = 's32[1]{0}', space=sflag, size = 0x4, scoped, tag = 'scoped memory for tpu_custom_call.1']
    #allocation7 [shape = 'u8[262144]{0}', space=vmem, size = 0x40000, scoped, tag = 'output window, operand 0']
    #allocation8 [shape = 'u8[131072]{0}', space=vmem, size = 0x20000, scoped, tag = 'output window, operand 1']
    #allocation9 [shape = 's32[2]{0}', space=sflag, size = 0x8, scoped, tag = 'scoped memory for tpu_custom_call.1']
    %10 = vsyncpa [#allocation3], 0
    %s11 = scalar_lea.sflag [#allocation3], 1
    %12 = vsyncpa %s11, 0
    %13 = vsyncpa [#allocation6], 0
    %14 = vsyncpa [#allocation4], 0
    %s15 = scalar_lea.sflag [#allocation4], 1
    %16 = vsyncpa %s15, 0
    %17 = vsyncpa [#allocation9], 0
    %s18 = scalar_lea.sflag [#allocation9], 1
    %19 = vsyncpa %s18, 0
    loop: start=0, step=1, limit=4
    $region2: #{tpu_custom_call.1} parent=1 // loop_pre_header
      _
    $region3: #{tpu_custom_call.1} parent=1 // loop_header
      %s21 = sphi 0, %s25
      %p22 = scmp.ge.s32.totalorder %s21, 4
      %s31 = sphi 0, %s33
      %s34 = sphi 0, %s31
      %s35 = sphi 0, %s34
      %s51 = sphi 0, %s35
      %s55 = sphi 0, %s55
      %s57 = sphi 0, %s55
      %s58 = sphi 0, %s57
      %s72 = sphi 0, %s58
      %s76 = sphi 0, %s76
      %s78 = sphi 0, %s76
      %s79 = sphi 0, %s78
      %s93 = sphi 0, %s79
      %s99 = sphi 0, %s101
      %s102 = sphi 0, %s99
      %s103 = sphi 0, %s102
      %s119 = sphi 0, %s103
      %s125 = sphi 0, %s127
      %s128 = sphi 0, %s125
      %s129 = sphi 0, %s128
      %s145 = sphi 0, %s129
    $region4: #{tpu_custom_call.1} parent=1 // loop_header_branch
      %24 = sbr.rel (%p22) target = $region8
    $region5: #{tpu_custom_call.1} parent=1 // loop_body
      %s26 = ssub.s32 %s21, 1
      %s27 = ssub.s32 %s21, 2
      %s28 = sadd.s32 %s21, 1
      %s29 = ssub.s32 %s21, %s28
      %p30 = scmp.eq.s32.totalorder %s29, 0
      %s32 = sadd.s32 %s31, 1
      %s33 = scalar_select %p30, %s31, %s32
      %p36 = pneg %p30
      %p37 = scmp.eq.s32.totalorder %s21, 1
      %p38 = por %p36, %p37
      %p39 = scmp.ne.s32.totalorder %s31, %s34
      %p40 = scmp.eq.s32.totalorder %s21, 0
      %p41 = por %p39, %p40
      %p42 = scmp.ne.s32.totalorder %s31, %s34
      %p43 = scmp.eq.s32.totalorder %s26, 1
      %p44 = por %p42, %p43
      %p45 = scmp.ne.s32.totalorder %s34, %s35
      %p46 = scmp.eq.s32.totalorder %s26, 0
      %p47 = por %p45, %p46
      %p48 = scmp.ne.s32.totalorder %s34, %s35
      %p49 = scmp.eq.s32.totalorder %s27, 1
      %p50 = por %p48, %p49
      %p52 = scmp.ne.s32.totalorder %s35, %s51
      %p53 = scmp.eq.s32.totalorder %s27, 0
      %p54 = por %p52, %p53
      %s56 = sadd.s32 %s55, 1
      %p59 = scmp.eq.s32.totalorder %s21, 1
      %p60 = scmp.ne.s32.totalorder %s55, %s57
      %p61 = scmp.eq.s32.totalorder %s21, 0
      %p62 = por %p60, %p61
      %p63 = scmp.ne.s32.totalorder %s55, %s57
      %p64 = scmp.eq.s32.totalorder %s26, 1
      %p65 = por %p63, %p64
      %p66 = scmp.ne.s32.totalorder %s57, %s58
      %p67 = scmp.eq.s32.totalorder %s26, 0
      %p68 = por %p66, %p67
      %p69 = scmp.ne.s32.totalorder %s57, %s58
      %p70 = scmp.eq.s32.totalorder %s27, 1
      %p71 = por %p69, %p70
      %p73 = scmp.ne.s32.totalorder %s58, %s72
      %p74 = scmp.eq.s32.totalorder %s27, 0
      %p75 = por %p73, %p74
      %s77 = sadd.s32 %s76, 1
      %p80 = scmp.eq.s32.totalorder %s21, 1
      %p81 = scmp.ne.s32.totalorder %s76, %s78
      %p82 = scmp.eq.s32.totalorder %s21, 0
      %p83 = por %p81, %p82
      %p84 = scmp.ne.s32.totalorder %s76, %s78
      %p85 = scmp.eq.s32.totalorder %s26, 1
      %p86 = por %p84, %p85
      %p87 = scmp.ne.s32.totalorder %s78, %s79
      %p88 = scmp.eq.s32.totalorder %s26, 0
      %p89 = por %p87, %p88
      %p90 = scmp.ne.s32.totalorder %s78, %s79
      %p91 = scmp.eq.s32.totalorder %s27, 1
      %p92 = por %p90, %p91
      %p94 = scmp.ne.s32.totalorder %s79, %s93
      %p95 = scmp.eq.s32.totalorder %s27, 0
      %p96 = por %p94, %p95
      %s97 = ssub.s32 %s21, %s28
      %p98 = scmp.eq.s32.totalorder %s97, 0
      %s100 = sadd.s32 %s99, 1
      %s101 = scalar_select %p98, %s99, %s100
      %p104 = pneg %p98
      %p105 = scmp.eq.s32.totalorder %s21, 1
      %p106 = por %p104, %p105
      %p107 = scmp.ne.s32.totalorder %s99, %s102
      %p108 = scmp.eq.s32.totalorder %s21, 0
      %p109 = por %p107, %p108
      %p110 = scmp.ne.s32.totalorder %s99, %s102
      %p111 = scmp.eq.s32.totalorder %s26, 1
      %p112 = por %p110, %p111
      %p113 = scmp.ne.s32.totalorder %s102, %s103
      %p114 = scmp.eq.s32.totalorder %s26, 0
      %p115 = por %p113, %p114
      %p116 = scmp.ne.s32.totalorder %s102, %s103
      %p117 = scmp.eq.s32.totalorder %s27, 1
      %p118 = por %p116, %p117
      %p120 = scmp.ne.s32.totalorder %s103, %s119
      %p121 = scmp.eq.s32.totalorder %s27, 0
      %p122 = por %p120, %p121
      %s123 = ssub.s32 %s21, %s28
      %p124 = scmp.eq.s32.totalorder %s123, 0
      %s126 = sadd.s32 %s125, 1
      %s127 = scalar_select %p124, %s125, %s126
      %p130 = pneg %p124
      %p131 = scmp.eq.s32.totalorder %s21, 1
      %p132 = por %p130, %p131
      %p133 = scmp.ne.s32.totalorder %s125, %s128
      %p134 = scmp.eq.s32.totalorder %s21, 0
      %p135 = por %p133, %p134
      %p136 = scmp.ne.s32.totalorder %s125, %s128
      %p137 = scmp.eq.s32.totalorder %s26, 1
      %p138 = por %p136, %p137
      %p139 = scmp.ne.s32.totalorder %s128, %s129
      %p140 = scmp.eq.s32.totalorder %s26, 0
      %p141 = por %p139, %p140
      %p142 = scmp.ne.s32.totalorder %s128, %s129
      %p143 = scmp.eq.s32.totalorder %s27, 1
      %p144 = por %p142, %p143
      %p146 = scmp.ne.s32.totalorder %s129, %s145
      %p147 = scmp.eq.s32.totalorder %s27, 0
      %p148 = por %p146, %p147
      %p149 = scmp.le.s32.totalorder 1, %s21
      %p150 = scmp.lt.s32.totalorder %s21, 3
      %p151 = pnand %p149, %p150
      %p152 = pneg %p151
      // Predicated region
      $region9: #{tpu_custom_call.1} parent=5 // pred_check
        _
      $region10: #{tpu_custom_call.1} parent=5 // pred_check_branch
        %154 = sbr.rel (%p151) target = $region12
      $region11: #{tpu_custom_call.1} parent=5 // pred_region
        %s155 = ssub.s32 %s21, 1
        // Predicated region
        $region13: #{tpu_custom_call.1} parent=11 // pred_check
          %p156 = pneg %p68
        $region14: #{tpu_custom_call.1} parent=11 // pred_check_branch
          %158 = sbr.rel (%p156) target = $region16
        $region15: #{tpu_custom_call.1} parent=11 // pred_region
          %160 = vsyncadd [#allocation6], 0
          %s161 = sshll.u32 %s1, 4
          %s162 = int_to_ptr.hbm [resolvable:$true] %s161
          %s163 = sshll.u32 [#allocation5], 4
          %s164 = int_to_ptr.vmem [resolvable:$true] %s163
          %169 = dma.hbm_to_vmem [thread:$0]  %s162, 4096, %s164, [#allocation6], 256, 256, 16
        $region16: #{tpu_custom_call.1} parent=11 // pred_fallthru
          _
        // Predicated region
        $region17: #{tpu_custom_call.1} parent=11 // pred_check
          %p170 = pneg %p89
        $region18: #{tpu_custom_call.1} parent=11 // pred_check_branch
          %172 = sbr.rel (%p170) target = $region20
        $region19: #{tpu_custom_call.1} parent=11 // pred_region
          _
        $region20: #{tpu_custom_call.1} parent=11 // pred_fallthru
          _
      $region12: #{tpu_custom_call.1} parent=5 // pred_fallthru
        _
      %p173 = scmp.lt.s32.totalorder %s21, 2
      // Predicated region
      $region21: #{tpu_custom_call.1} parent=5 // pred_check
        %p174 = pneg %p173
      $region22: #{tpu_custom_call.1} parent=5 // pred_check_branch
        %176 = sbr.rel (%p174) target = $region24
      $region23: #{tpu_custom_call.1} parent=5 // pred_region
        // Predicated region
        $region25: #{tpu_custom_call.1} parent=23 // pred_check
          %p177 = pneg %p41
        $region26: #{tpu_custom_call.1} parent=23 // pred_check_branch
          %179 = sbr.rel (%p177) target = $region28
        $region27: #{tpu_custom_call.1} parent=23 // pred_region
          %s180 = sand.u32 %s31, 1
          %s181 = scalar_lea.sflag [#allocation3], %s180
          %s182 = sand.u32 %s31, 1
          %s183 = smul.addr %s182, 256
          %s184 = scalar_lea.vmem [#allocation2], %s183
          %s185 = smul.u32 32, %s21
          %187 = vsyncadd %s181, 0
          %s188 = smul.addr %s185, 8
          %s189 = scalar_lea.hbm %s0, %s188
          %s190 = sshll.u32 %s189, 4
          %s191 = int_to_ptr.hbm [resolvable:$true] %s190
          %s192 = sshll.u32 %s184, 4
          %s193 = int_to_ptr.vmem [resolvable:$true] %s192
          %198 = dma.hbm_to_vmem [thread:$0]  %s191, 4096, %s193, %s181, 128, 128, 8
        $region28: #{tpu_custom_call.1} parent=23 // pred_fallthru
          _
      $region24: #{tpu_custom_call.1} parent=5 // pred_fallthru
        _
      %p199 = scmp.le.s32.totalorder 1, %s21
      %p200 = scmp.lt.s32.totalorder %s21, 3
      %p201 = pnand %p199, %p200
      %p202 = pneg %p201
      // Predicated region
      $region29: #{tpu_custom_call.1} parent=5 // pred_check
        _
      $region30: #{tpu_custom_call.1} parent=5 // pred_check_branch
        %204 = sbr.rel (%p201) target = $region32
      $region31: #{tpu_custom_call.1} parent=5 // pred_region
        %s205 = ssub.s32 %s21, 1
        %s206 = sand.u32 %s34, 1
        %s207 = scalar_lea.sflag [#allocation3], %s206
        %s208 = sand.u32 %s34, 1
        %s209 = smul.addr %s208, 256
        %s210 = scalar_lea.vmem [#allocation2], %s209
        // Predicated region
        $region33: #{tpu_custom_call.1} parent=31 // pred_check
          %p211 = pneg %p47
        $region34: #{tpu_custom_call.1} parent=31 // pred_check_branch
          %213 = sbr.rel (%p211) target = $region36
        $region35: #{tpu_custom_call.1} parent=31 // pred_region
          %215 = dma.done %s207, 4096
        $region36: #{tpu_custom_call.1} parent=31 // pred_fallthru
          _
        // Predicated region
        $region37: #{tpu_custom_call.1} parent=31 // pred_check
          %p216 = pneg %p68
        $region38: #{tpu_custom_call.1} parent=31 // pred_check_branch
          %218 = sbr.rel (%p216) target = $region40
        $region39: #{tpu_custom_call.1} parent=31 // pred_region
          %220 = dma.done [#allocation6], 4096
        $region40: #{tpu_custom_call.1} parent=31 // pred_fallthru
          _
        %s221 = sand.u32 %s34, 1
        %s222 = scalar_lea.sflag [#allocation3], %s221
        %s223 = sand.u32 %s34, 1
        %s224 = smul.addr %s223, 256
        %s225 = scalar_lea.vmem [#allocation2], %s224
        %p226 = pneg %p47
        %p227 = pneg %p44
        %p228 = pneg %p68
        %p229 = pneg %p65
        %p230 = pneg %p89
        %p231 = pneg %p86
        %p232 = pneg %p115
        %p233 = pneg %p112
        %s234 = sand.u32 %s102, 1
        %s235 = scalar_lea.sflag [#allocation4], %s234
        %s236 = sand.u32 %s102, 1
        %s237 = smul.addr %s236, 256
        %s238 = scalar_lea.vmem [#allocation7], %s237
        %p239 = pneg %p141
        %p240 = pneg %p138
        %s241 = sand.u32 %s128, 1
        %s242 = scalar_lea.sflag [#allocation9], %s241
        %s243 = sand.u32 %s128, 1
        %s244 = smul.addr %s243, 128
        %s245 = scalar_lea.vmem [#allocation8], %s244
        %s246 = smul.u32 32, %s26
        %s247 = smul.u32 32, %s26
        %s248 = smul.u32 32, %s26
        %v249 = vld [vmem:[%s210] sm:$0xff]
        %v250 = vld [vmem:[%s210 + $0x8] sm:$0xff]
        %v251 = vld [vmem:[%s210 + $0x10] sm:$0xff]
        %v252 = vld [vmem:[%s210 + $0x18] sm:$0xff]
        %v253 = vld [vmem:[%s210 + $0x20] sm:$0xff]
        %v254 = vld [vmem:[%s210 + $0x28] sm:$0xff]
        %v255 = vld [vmem:[%s210 + $0x30] sm:$0xff]
        %v256 = vld [vmem:[%s210 + $0x38] sm:$0xff]
        %v257 = vld [vmem:[%s210 + $0x40] sm:$0xff]
        %v258 = vld [vmem:[%s210 + $0x48] sm:$0xff]
        %v259 = vld [vmem:[%s210 + $0x50] sm:$0xff]
        %v260 = vld [vmem:[%s210 + $0x58] sm:$0xff]
        %v261 = vld [vmem:[%s210 + $0x60] sm:$0xff]
        %v262 = vld [vmem:[%s210 + $0x68] sm:$0xff]
        %v263 = vld [vmem:[%s210 + $0x70] sm:$0xff]
        %v264 = vld [vmem:[%s210 + $0x78] sm:$0xff]
        %v265 = vld [vmem:[%s210 + $0x80] sm:$0xff]
        %v266 = vld [vmem:[%s210 + $0x88] sm:$0xff]
        %v267 = vld [vmem:[%s210 + $0x90] sm:$0xff]
        %v268 = vld [vmem:[%s210 + $0x98] sm:$0xff]
        %v269 = vld [vmem:[%s210 + $0xa0] sm:$0xff]
        %v270 = vld [vmem:[%s210 + $0xa8] sm:$0xff]
        %v271 = vld [vmem:[%s210 + $0xb0] sm:$0xff]
        %v272 = vld [vmem:[%s210 + $0xb8] sm:$0xff]
        %v273 = vld [vmem:[%s210 + $0xc0] sm:$0xff]
        %v274 = vld [vmem:[%s210 + $0xc8] sm:$0xff]
        %v275 = vld [vmem:[%s210 + $0xd0] sm:$0xff]
        %v276 = vld [vmem:[%s210 + $0xd8] sm:$0xff]
        %v277 = vld [vmem:[%s210 + $0xe0] sm:$0xff]
        %v278 = vld [vmem:[%s210 + $0xe8] sm:$0xff]
        %v279 = vld [vmem:[%s210 + $0xf0] sm:$0xff]
        %v280 = vld [vmem:[%s210 + $0xf8] sm:$0xff]
        %v281 = vld [vmem:[#allocation5] sm:$0xff]
        %v282 = vld [vmem:[#allocation5 + $0x8] sm:$0xff]
        %v283 = vld [vmem:[#allocation5 + $0x10] sm:$0xff]
        %v284 = vld [vmem:[#allocation5 + $0x18] sm:$0xff]
        %v285 = vld [vmem:[#allocation5 + $0x20] sm:$0xff]
        %v286 = vld [vmem:[#allocation5 + $0x28] sm:$0xff]
        %v287 = vld [vmem:[#allocation5 + $0x30] sm:$0xff]
        %v288 = vld [vmem:[#allocation5 + $0x38] sm:$0xff]
        %v289 = vld [vmem:[#allocation5 + $0x40] sm:$0xff]
        %v290 = vld [vmem:[#allocation5 + $0x48] sm:$0xff]
        %v291 = vld [vmem:[#allocation5 + $0x50] sm:$0xff]
        %v292 = vld [vmem:[#allocation5 + $0x58] sm:$0xff]
        %v293 = vld [vmem:[#allocation5 + $0x60] sm:$0xff]
        %v294 = vld [vmem:[#allocation5 + $0x68] sm:$0xff]
        %v295 = vld [vmem:[#allocation5 + $0x70] sm:$0xff]
        %v296 = vld [vmem:[#allocation5 + $0x78] sm:$0xff]
        %v297 = vld [vmem:[#allocation5 + $0x80] sm:$0xff]
        %v298 = vld [vmem:[#allocation5 + $0x88] sm:$0xff]
        %v299 = vld [vmem:[#allocation5 + $0x90] sm:$0xff]
        %v300 = vld [vmem:[#allocation5 + $0x98] sm:$0xff]
        %v301 = vld [vmem:[#allocation5 + $0xa0] sm:$0xff]
        %v302 = vld [vmem:[#allocation5 + $0xa8] sm:$0xff]
        %v303 = vld [vmem:[#allocation5 + $0xb0] sm:$0xff]
        %v304 = vld [vmem:[#allocation5 + $0xb8] sm:$0xff]
        %v305 = vld [vmem:[#allocation5 + $0xc0] sm:$0xff]
        %v306 = vld [vmem:[#allocation5 + $0xc8] sm:$0xff]
        %v307 = vld [vmem:[#allocation5 + $0xd0] sm:$0xff]
        %v308 = vld [vmem:[#allocation5 + $0xd8] sm:$0xff]
        %v309 = vld [vmem:[#allocation5 + $0xe0] sm:$0xff]
        %v310 = vld [vmem:[#allocation5 + $0xe8] sm:$0xff]
        %v311 = vld [vmem:[#allocation5 + $0xf0] sm:$0xff]
        %v312 = vld [vmem:[#allocation5 + $0xf8] sm:$0xff]
        %313 = vmatpush.msra.mxu0 %v311
        %314 = vmatpush.msra.mxu0 %v309
        %315 = vmatpush.msra.mxu0 %v307
        %316 = vmatpush.msra.mxu0 %v305
        %317 = vmatpush.msra.mxu0 %v303
        %318 = vmatpush.msra.mxu0 %v301
        %319 = vmatpush.msra.mxu0 %v299
        %320 = vmatpush.msra.mxu0 %v297
        %321 = vmatpush.msra.mxu0 %v295
        %322 = vmatpush.msra.mxu0 %v293
        %323 = vmatpush.msra.mxu0 %v291
        %324 = vmatpush.msra.mxu0 %v289
        %325 = vmatpush.msra.mxu0 %v287
        %326 = vmatpush.msra.mxu0 %v285
        %327 = vmatpush.msra.mxu0 %v283
        %328 = vmatpush.msra.mxu0 %v281
        %329 = vmatmul.f32.gmra.mxu0 %v249
        %v330 = vpop.f32.mrf.mxu0
        %v331 = vadd.f32 0.0, %v330
        %332 = vmatmul.f32.gmra.mxu0 %v250
        %v333 = vpop.f32.mrf.mxu0
        %v334 = vadd.f32 0.0, %v333
        %335 = vmatmul.f32.gmra.mxu0 %v251
        %v336 = vpop.f32.mrf.mxu0
        %v337 = vadd.f32 0.0, %v336
        %338 = vmatmul.f32.gmra.mxu0 %v252
        %v339 = vpop.f32.mrf.mxu0
        %v340 = vadd.f32 0.0, %v339
        %341 = vmatmul.f32.gmra.mxu0 %v253
        %v342 = vpop.f32.mrf.mxu0
        %v343 = vadd.f32 0.0, %v342
        %344 = vmatmul.f32.gmra.mxu0 %v254
        %v345 = vpop.f32.mrf.mxu0
        %v346 = vadd.f32 0.0, %v345
        %347 = vmatmul.f32.gmra.mxu0 %v255
        %v348 = vpop.f32.mrf.mxu0
        %v349 = vadd.f32 0.0, %v348
        %350 = vmatmul.f32.gmra.mxu0 %v256
        %v351 = vpop.f32.mrf.mxu0
        %v352 = vadd.f32 0.0, %v351
        %353 = vmatmul.f32.gmra.mxu0 %v257
        %v354 = vpop.f32.mrf.mxu0
        %v355 = vadd.f32 0.0, %v354
        %356 = vmatmul.f32.gmra.mxu0 %v258
        %v357 = vpop.f32.mrf.mxu0
        %v358 = vadd.f32 0.0, %v357
        %359 = vmatmul.f32.gmra.mxu0 %v259
        %v360 = vpop.f32.mrf.mxu0
        %v361 = vadd.f32 0.0, %v360
        %362 = vmatmul.f32.gmra.mxu0 %v260
        %v363 = vpop.f32.mrf.mxu0
        %v364 = vadd.f32 0.0, %v363
        %365 = vmatmul.f32.gmra.mxu0 %v261
        %v366 = vpop.f32.mrf.mxu0
        %v367 = vadd.f32 0.0, %v366
        %368 = vmatmul.f32.gmra.mxu0 %v262
        %v369 = vpop.f32.mrf.mxu0
        %v370 = vadd.f32 0.0, %v369
        %371 = vmatmul.f32.gmra.mxu0 %v263
        %v372 = vpop.f32.mrf.mxu0
        %v373 = vadd.f32 0.0, %v372
        %374 = vmatmul.f32.gmra.mxu0 %v264
        %v375 = vpop.f32.mrf.mxu0
        %v376 = vadd.f32 0.0, %v375
        %377 = vmatmul.f32.gmra.mxu0 %v265
        %v378 = vpop.f32.mrf.mxu0
        %v379 = vadd.f32 0.0, %v378
        %380 = vmatmul.f32.gmra.mxu0 %v266
        %v381 = vpop.f32.mrf.mxu0
        %v382 = vadd.f32 0.0, %v381
        %383 = vmatmul.f32.gmra.mxu0 %v267
        %v384 = vpop.f32.mrf.mxu0
        %v385 = vadd.f32 0.0, %v384
        %386 = vmatmul.f32.gmra.mxu0 %v268
        %v387 = vpop.f32.mrf.mxu0
        %v388 = vadd.f32 0.0, %v387
        %389 = vmatmul.f32.gmra.mxu0 %v269
        %v390 = vpop.f32.mrf.mxu0
        %v391 = vadd.f32 0.0, %v390
        %392 = vmatmul.f32.gmra.mxu0 %v270
        %v393 = vpop.f32.mrf.mxu0
        %v394 = vadd.f32 0.0, %v393
        %395 = vmatmul.f32.gmra.mxu0 %v271
        %v396 = vpop.f32.mrf.mxu0
        %v397 = vadd.f32 0.0, %v396
        %398 = vmatmul.f32.gmra.mxu0 %v272
        %v399 = vpop.f32.mrf.mxu0
        %v400 = vadd.f32 0.0, %v399
        %401 = vmatmul.f32.gmra.mxu0 %v273
        %v402 = vpop.f32.mrf.mxu0
        %v403 = vadd.f32 0.0, %v402
        %404 = vmatmul.f32.gmra.mxu0 %v274
        %v405 = vpop.f32.mrf.mxu0
        %v406 = vadd.f32 0.0, %v405
        %407 = vmatmul.f32.gmra.mxu0 %v275
        %v408 = vpop.f32.mrf.mxu0
        %v409 = vadd.f32 0.0, %v408
        %410 = vmatmul.f32.gmra.mxu0 %v276
        %v411 = vpop.f32.mrf.mxu0
        %v412 = vadd.f32 0.0, %v411
        %413 = vmatmul.f32.gmra.mxu0 %v277
        %v414 = vpop.f32.mrf.mxu0
        %v415 = vadd.f32 0.0, %v414
        %416 = vmatmul.f32.gmra.mxu0 %v278
        %v417 = vpop.f32.mrf.mxu0
        %v418 = vadd.f32 0.0, %v417
        %419 = vmatmul.f32.gmra.mxu0 %v279
        %v420 = vpop.f32.mrf.mxu0
        %v421 = vadd.f32 0.0, %v420
        %422 = vmatmul.f32.gmra.mxu0 %v280
        %v423 = vpop.f32.mrf.mxu0
        %v424 = vadd.f32 0.0, %v423
        %425 = vdwg.mxu0
        %426 = vmatpush.msra.mxu0 %v312
        %427 = vmatpush.msra.mxu0 %v310
        %428 = vmatpush.msra.mxu0 %v308
        %429 = vmatpush.msra.mxu0 %v306
        %430 = vmatpush.msra.mxu0 %v304
        %431 = vmatpush.msra.mxu0 %v302
        %432 = vmatpush.msra.mxu0 %v300
        %433 = vmatpush.msra.mxu0 %v298
        %434 = vmatpush.msra.mxu0 %v296
        %435 = vmatpush.msra.mxu0 %v294
        %436 = vmatpush.msra.mxu0 %v292
        %437 = vmatpush.msra.mxu0 %v290
        %438 = vmatpush.msra.mxu0 %v288
        %439 = vmatpush.msra.mxu0 %v286
        %440 = vmatpush.msra.mxu0 %v284
        %441 = vmatpush.msra.mxu0 %v282
        %442 = vmatmul.f32.gmra.mxu0 %v249
        %v443 = vpop.f32.mrf.mxu0
        %v444 = vadd.f32 0.0, %v443
        %445 = vmatmul.f32.gmra.mxu0 %v250
        %v446 = vpop.f32.mrf.mxu0
        %v447 = vadd.f32 0.0, %v446
        %448 = vmatmul.f32.gmra.mxu0 %v251
        %v449 = vpop.f32.mrf.mxu0
        %v450 = vadd.f32 0.0, %v449
        %451 = vmatmul.f32.gmra.mxu0 %v252
        %v452 = vpop.f32.mrf.mxu0
        %v453 = vadd.f32 0.0, %v452
        %454 = vmatmul.f32.gmra.mxu0 %v253
        %v455 = vpop.f32.mrf.mxu0
        %v456 = vadd.f32 0.0, %v455
        %457 = vmatmul.f32.gmra.mxu0 %v254
        %v458 = vpop.f32.mrf.mxu0
        %v459 = vadd.f32 0.0, %v458
        %460 = vmatmul.f32.gmra.mxu0 %v255
        %v461 = vpop.f32.mrf.mxu0
        %v462 = vadd.f32 0.0, %v461
        %463 = vmatmul.f32.gmra.mxu0 %v256
        %v464 = vpop.f32.mrf.mxu0
        %v465 = vadd.f32 0.0, %v464
        %466 = vmatmul.f32.gmra.mxu0 %v257
        %v467 = vpop.f32.mrf.mxu0
        %v468 = vadd.f32 0.0, %v467
        %469 = vmatmul.f32.gmra.mxu0 %v258
        %v470 = vpop.f32.mrf.mxu0
        %v471 = vadd.f32 0.0, %v470
        %472 = vmatmul.f32.gmra.mxu0 %v259
        %v473 = vpop.f32.mrf.mxu0
        %v474 = vadd.f32 0.0, %v473
        %475 = vmatmul.f32.gmra.mxu0 %v260
        %v476 = vpop.f32.mrf.mxu0
        %v477 = vadd.f32 0.0, %v476
        %478 = vmatmul.f32.gmra.mxu0 %v261
        %v479 = vpop.f32.mrf.mxu0
        %v480 = vadd.f32 0.0, %v479
        %481 = vmatmul.f32.gmra.mxu0 %v262
        %v482 = vpop.f32.mrf.mxu0
        %v483 = vadd.f32 0.0, %v482
        %484 = vmatmul.f32.gmra.mxu0 %v263
        %v485 = vpop.f32.mrf.mxu0
        %v486 = vadd.f32 0.0, %v485
        %487 = vmatmul.f32.gmra.mxu0 %v264
        %v488 = vpop.f32.mrf.mxu0
        %v489 = vadd.f32 0.0, %v488
        %490 = vmatmul.f32.gmra.mxu0 %v265
        %v491 = vpop.f32.mrf.mxu0
        %v492 = vadd.f32 0.0, %v491
        %493 = vmatmul.f32.gmra.mxu0 %v266
        %v494 = vpop.f32.mrf.mxu0
        %v495 = vadd.f32 0.0, %v494
        %496 = vmatmul.f32.gmra.mxu0 %v267
        %v497 = vpop.f32.mrf.mxu0
        %v498 = vadd.f32 0.0, %v497
        %499 = vmatmul.f32.gmra.mxu0 %v268
        %v500 = vpop.f32.mrf.mxu0
        %v501 = vadd.f32 0.0, %v500
        %502 = vmatmul.f32.gmra.mxu0 %v269
        %v503 = vpop.f32.mrf.mxu0
        %v504 = vadd.f32 0.0, %v503
        %505 = vmatmul.f32.gmra.mxu0 %v270
        %v506 = vpop.f32.mrf.mxu0
        %v507 = vadd.f32 0.0, %v506
        %508 = vmatmul.f32.gmra.mxu0 %v271
        %v509 = vpop.f32.mrf.mxu0
        %v510 = vadd.f32 0.0, %v509
        %511 = vmatmul.f32.gmra.mxu0 %v272
        %v512 = vpop.f32.mrf.mxu0
        %v513 = vadd.f32 0.0, %v512
        %514 = vmatmul.f32.gmra.mxu0 %v273
        %v515 = vpop.f32.mrf.mxu0
        %v516 = vadd.f32 0.0, %v515
        %517 = vmatmul.f32.gmra.mxu0 %v274
        %v518 = vpop.f32.mrf.mxu0
        %v519 = vadd.f32 0.0, %v518
        %520 = vmatmul.f32.gmra.mxu0 %v275
        %v521 = vpop.f32.mrf.mxu0
        %v522 = vadd.f32 0.0, %v521
        %523 = vmatmul.f32.gmra.mxu0 %v276
        %v524 = vpop.f32.mrf.mxu0
        %v525 = vadd.f32 0.0, %v524
        %526 = vmatmul.f32.gmra.mxu0 %v277
        %v527 = vpop.f32.mrf.mxu0
        %v528 = vadd.f32 0.0, %v527
        %529 = vmatmul.f32.gmra.mxu0 %v278
        %v530 = vpop.f32.mrf.mxu0
        %v531 = vadd.f32 0.0, %v530
        %532 = vmatmul.f32.gmra.mxu0 %v279
        %v533 = vpop.f32.mrf.mxu0
        %v534 = vadd.f32 0.0, %v533
        %535 = vmatmul.f32.gmra.mxu0 %v280
        %v536 = vpop.f32.mrf.mxu0
        %v537 = vadd.f32 0.0, %v536
        %538 = vdwg.mxu0
        %v539 = vld [vmem:[%s2] sm:$0x1]
        %v541 = vperm.slane %v539, 0
        %v543 = vadd.f32 %v331, %v541
        %v544 = vadd.f32 %v334, %v541
        %v545 = vadd.f32 %v337, %v541
        %v546 = vadd.f32 %v340, %v541
        %v547 = vadd.f32 %v343, %v541
        %v548 = vadd.f32 %v346, %v541
        %v549 = vadd.f32 %v349, %v541
        %v550 = vadd.f32 %v352, %v541
        %v551 = vadd.f32 %v355, %v541
        %v552 = vadd.f32 %v358, %v541
        %v553 = vadd.f32 %v361, %v541
        %v554 = vadd.f32 %v364, %v541
        %v555 = vadd.f32 %v367, %v541
        %v556 = vadd.f32 %v370, %v541
        %v557 = vadd.f32 %v373, %v541
        %v558 = vadd.f32 %v376, %v541
        %v559 = vadd.f32 %v379, %v541
        %v560 = vadd.f32 %v382, %v541
        %v561 = vadd.f32 %v385, %v541
        %v562 = vadd.f32 %v388, %v541
        %v563 = vadd.f32 %v391, %v541
        %v564 = vadd.f32 %v394, %v541
        %v565 = vadd.f32 %v397, %v541
        %v566 = vadd.f32 %v400, %v541
        %v567 = vadd.f32 %v403, %v541
        %v568 = vadd.f32 %v406, %v541
        %v569 = vadd.f32 %v409, %v541
        %v570 = vadd.f32 %v412, %v541
        %v571 = vadd.f32 %v415, %v541
        %v572 = vadd.f32 %v418, %v541
        %v573 = vadd.f32 %v421, %v541
        %v574 = vadd.f32 %v424, %v541
        %575 = vst [vmem:[%s238] sm:$0xff] %v543
        %576 = vst [vmem:[%s238 + $0x8] sm:$0xff] %v544
        %577 = vst [vmem:[%s238 + $0x10] sm:$0xff] %v545
        %578 = vst [vmem:[%s238 + $0x18] sm:$0xff] %v546
        %579 = vst [vmem:[%s238 + $0x20] sm:$0xff] %v547
        %580 = vst [vmem:[%s238 + $0x28] sm:$0xff] %v548
        %581 = vst [vmem:[%s238 + $0x30] sm:$0xff] %v549
        %582 = vst [vmem:[%s238 + $0x38] sm:$0xff] %v550
        %583 = vst [vmem:[%s238 + $0x40] sm:$0xff] %v551
        %584 = vst [vmem:[%s238 + $0x48] sm:$0xff] %v552
        %585 = vst [vmem:[%s238 + $0x50] sm:$0xff] %v553
        %586 = vst [vmem:[%s238 + $0x58] sm:$0xff] %v554
        %587 = vst [vmem:[%s238 + $0x60] sm:$0xff] %v555
        %588 = vst [vmem:[%s238 + $0x68] sm:$0xff] %v556
        %589 = vst [vmem:[%s238 + $0x70] sm:$0xff] %v557
        %590 = vst [vmem:[%s238 + $0x78] sm:$0xff] %v558
        %591 = vst [vmem:[%s238 + $0x80] sm:$0xff] %v559
        %592 = vst [vmem:[%s238 + $0x88] sm:$0xff] %v560
        %593 = vst [vmem:[%s238 + $0x90] sm:$0xff] %v561
        %594 = vst [vmem:[%s238 + $0x98] sm:$0xff] %v562
        %595 = vst [vmem:[%s238 + $0xa0] sm:$0xff] %v563
        %596 = vst [vmem:[%s238 + $0xa8] sm:$0xff] %v564
        %597 = vst [vmem:[%s238 + $0xb0] sm:$0xff] %v565
        %598 = vst [vmem:[%s238 + $0xb8] sm:$0xff] %v566
        %599 = vst [vmem:[%s238 + $0xc0] sm:$0xff] %v567
        %600 = vst [vmem:[%s238 + $0xc8] sm:$0xff] %v568
        %601 = vst [vmem:[%s238 + $0xd0] sm:$0xff] %v569
        %602 = vst [vmem:[%s238 + $0xd8] sm:$0xff] %v570
        %603 = vst [vmem:[%s238 + $0xe0] sm:$0xff] %v571
        %604 = vst [vmem:[%s238 + $0xe8] sm:$0xff] %v572
        %605 = vst [vmem:[%s238 + $0xf0] sm:$0xff] %v573
        %606 = vst [vmem:[%s238 + $0xf8] sm:$0xff] %v574
        %v607 = vpack.c.bf16 %v444, %v444
        %v608 = vpack.c.bf16 %v447, %v447
        %v609 = vpack.c.bf16 %v450, %v450
        %v610 = vpack.c.bf16 %v453, %v453
        %v611 = vpack.c.bf16 %v456, %v456
        %v612 = vpack.c.bf16 %v459, %v459
        %v613 = vpack.c.bf16 %v462, %v462
        %v614 = vpack.c.bf16 %v465, %v465
        %v615 = vpack.c.bf16 %v468, %v468
        %v616 = vpack.c.bf16 %v471, %v471
        %v617 = vpack.c.bf16 %v474, %v474
        %v618 = vpack.c.bf16 %v477, %v477
        %v619 = vpack.c.bf16 %v480, %v480
        %v620 = vpack.c.bf16 %v483, %v483
        %v621 = vpack.c.bf16 %v486, %v486
        %v622 = vpack.c.bf16 %v489, %v489
        %v623 = vpack.c.bf16 %v492, %v492
        %v624 = vpack.c.bf16 %v495, %v495
        %v625 = vpack.c.bf16 %v498, %v498
        %v626 = vpack.c.bf16 %v501, %v501
        %v627 = vpack.c.bf16 %v504, %v504
        %v628 = vpack.c.bf16 %v507, %v507
        %v629 = vpack.c.bf16 %v510, %v510
        %v630 = vpack.c.bf16 %v513, %v513
        %v631 = vpack.c.bf16 %v516, %v516
        %v632 = vpack.c.bf16 %v519, %v519
        %v633 = vpack.c.bf16 %v522, %v522
        %v634 = vpack.c.bf16 %v525, %v525
        %v635 = vpack.c.bf16 %v528, %v528
        %v636 = vpack.c.bf16 %v531, %v531
        %v637 = vpack.c.bf16 %v534, %v534
        %v638 = vpack.c.bf16 %v537, %v537
        %639 = vst [vmem:[%s245] sm:$0xf] %v607
        %640 = vst [vmem:[%s245 + $0x4] sm:$0xf] %v608
        %641 = vst [vmem:[%s245 + $0x8] sm:$0xf] %v609
        %642 = vst [vmem:[%s245 + $0xc] sm:$0xf] %v610
        %643 = vst [vmem:[%s245 + $0x10] sm:$0xf] %v611
        %644 = vst [vmem:[%s245 + $0x14] sm:$0xf] %v612
        %645 = vst [vmem:[%s245 + $0x18] sm:$0xf] %v613
        %646 = vst [vmem:[%s245 + $0x1c] sm:$0xf] %v614
        %647 = vst [vmem:[%s245 + $0x20] sm:$0xf] %v615
        %648 = vst [vmem:[%s245 + $0x24] sm:$0xf] %v616
        %649 = vst [vmem:[%s245 + $0x28] sm:$0xf] %v617
        %650 = vst [vmem:[%s245 + $0x2c] sm:$0xf] %v618
        %651 = vst [vmem:[%s245 + $0x30] sm:$0xf] %v619
        %652 = vst [vmem:[%s245 + $0x34] sm:$0xf] %v620
        %653 = vst [vmem:[%s245 + $0x38] sm:$0xf] %v621
        %654 = vst [vmem:[%s245 + $0x3c] sm:$0xf] %v622
        %655 = vst [vmem:[%s245 + $0x40] sm:$0xf] %v623
        %656 = vst [vmem:[%s245 + $0x44] sm:$0xf] %v624
        %657 = vst [vmem:[%s245 + $0x48] sm:$0xf] %v625
        %658 = vst [vmem:[%s245 + $0x4c] sm:$0xf] %v626
        %659 = vst [vmem:[%s245 + $0x50] sm:$0xf] %v627
        %660 = vst [vmem:[%s245 + $0x54] sm:$0xf] %v628
        %661 = vst [vmem:[%s245 + $0x58] sm:$0xf] %v629
        %662 = vst [vmem:[%s245 + $0x5c] sm:$0xf] %v630
        %663 = vst [vmem:[%s245 + $0x60] sm:$0xf] %v631
        %664 = vst [vmem:[%s245 + $0x64] sm:$0xf] %v632
        %665 = vst [vmem:[%s245 + $0x68] sm:$0xf] %v633
        %666 = vst [vmem:[%s245 + $0x6c] sm:$0xf] %v634
        %667 = vst [vmem:[%s245 + $0x70] sm:$0xf] %v635
        %668 = vst [vmem:[%s245 + $0x74] sm:$0xf] %v636
        %669 = vst [vmem:[%s245 + $0x78] sm:$0xf] %v637
        %670 = vst [vmem:[%s245 + $0x7c] sm:$0xf] %v638
        %s671 = sand.u32 %s102, 1
        %s672 = scalar_lea.sflag [#allocation4], %s671
        %s673 = sand.u32 %s102, 1
        %s674 = smul.addr %s673, 256
        %s675 = scalar_lea.vmem [#allocation7], %s674
        %s676 = sand.u32 %s128, 1
        %s677 = scalar_lea.sflag [#allocation9], %s676
        %s678 = sand.u32 %s128, 1
        %s679 = smul.addr %s678, 128
        %s680 = scalar_lea.vmem [#allocation8], %s679
        // Predicated region
        $region41: #{tpu_custom_call.1} parent=31 // pred_check
          %p681 = pneg %p112
        $region42: #{tpu_custom_call.1} parent=31 // pred_check_branch
          %683 = sbr.rel (%p681) target = $region44
        $region43: #{tpu_custom_call.1} parent=31 // pred_region
          %s684 = smul.u32 32, %s26
          %686 = vsyncadd %s672, 0
          %s687 = smul.addr %s684, 8
          %s688 = scalar_lea.hbm %s3, %s687
          %s689 = sshll.u32 %s675, 4
          %s690 = int_to_ptr.vmem [resolvable:$true] %s689
          %s691 = sshll.u32 %s688, 4
          %s692 = int_to_ptr.hbm [resolvable:$true] %s691
          %697 = dma.vmem_to_hbm [thread:$0]  %s690, 4096, %s692, %s672, 128, 128, 8
        $region44: #{tpu_custom_call.1} parent=31 // pred_fallthru
          _
        // Predicated region
        $region45: #{tpu_custom_call.1} parent=31 // pred_check
          %p698 = pneg %p138
        $region46: #{tpu_custom_call.1} parent=31 // pred_check_branch
          %700 = sbr.rel (%p698) target = $region48
        $region47: #{tpu_custom_call.1} parent=31 // pred_region
          %s701 = smul.u32 32, %s26
          %703 = vsyncadd %s677, 0
          %s704 = smul.addr %s701, 4
          %s705 = scalar_lea.hbm %s4, %s704
          %s706 = sshll.u32 %s680, 4
          %s707 = int_to_ptr.vmem [resolvable:$true] %s706
          %s708 = sshll.u32 %s705, 4
          %s709 = int_to_ptr.hbm [resolvable:$true] %s708
          %714 = dma.vmem_to_hbm [thread:$0]  %s707, 2048, %s709, %s677, 64, 64, 4
        $region48: #{tpu_custom_call.1} parent=31 // pred_fallthru
          _
      $region32: #{tpu_custom_call.1} parent=5 // pred_fallthru
        _
      %p715 = scmp.le.s32.totalorder 2, %s21
      // Predicated region
      $region49: #{tpu_custom_call.1} parent=5 // pred_check
        %p716 = pneg %p715
      $region50: #{tpu_custom_call.1} parent=5 // pred_check_branch
        %718 = sbr.rel (%p716) target = $region52
      $region51: #{tpu_custom_call.1} parent=5 // pred_region
        %s719 = ssub.s32 %s21, 2
        // Predicated region
        $region53: #{tpu_custom_call.1} parent=51 // pred_check
          %p720 = pneg %p118
        $region54: #{tpu_custom_call.1} parent=51 // pred_check_branch
          %722 = sbr.rel (%p720) target = $region56
        $region55: #{tpu_custom_call.1} parent=51 // pred_region
          %s723 = sand.u32 %s103, 1
          %s724 = scalar_lea.sflag [#allocation4], %s723
          %s725 = sand.u32 %s103, 1
          %s726 = smul.addr %s725, 256
          %s727 = scalar_lea.vmem [#allocation7], %s726
          %729 = dma.done %s724, 4096
        $region56: #{tpu_custom_call.1} parent=51 // pred_fallthru
          _
        // Predicated region
        $region57: #{tpu_custom_call.1} parent=51 // pred_check
          %p730 = pneg %p144
        $region58: #{tpu_custom_call.1} parent=51 // pred_check_branch
          %732 = sbr.rel (%p730) target = $region60
        $region59: #{tpu_custom_call.1} parent=51 // pred_region
          %s733 = sand.u32 %s129, 1
          %s734 = scalar_lea.sflag [#allocation9], %s733
          %s735 = sand.u32 %s129, 1
          %s736 = smul.addr %s735, 128
          %s737 = scalar_lea.vmem [#allocation8], %s736
          %739 = dma.done %s734, 2048
        $region60: #{tpu_custom_call.1} parent=51 // pred_fallthru
          _
      $region52: #{tpu_custom_call.1} parent=5 // pred_fallthru
        _
    $region6: #{tpu_custom_call.1} parent=1 // loop_footer
      %s25 = sadd.s32 1, %s21
    $region7: #{tpu_custom_call.1} parent=1 // loop_footer_branch
      %20 = sbr.rel target = $region3
    $region8: #{tpu_custom_call.1} parent=1 // loop_exit
      _
    %740 = vsyncpa [#allocation3], 1
    %s741 = scalar_lea.sflag [#allocation3], 1
    %742 = vsyncpa %s741, 1
    %743 = vsyncpa [#allocation6], 1
    %744 = vsyncpa [#allocation4], 1
    %s745 = scalar_lea.sflag [#allocation4], 1
    %746 = vsyncpa %s745, 1
    %747 = vsyncpa [#allocation9], 1
    %s748 = scalar_lea.sflag [#allocation9], 1
    %749 = vsyncpa %s748, 1

</llo_original>
